<compile_context>
chip_gen: v7x
topology: tpu7x:2x2x1
jax: 0.10.0
libtpu: 0.0.40
codegen_flags: <defaults>
</compile_context>

<pallas_src>
import functools

import jax
import jax.numpy as jnp
from jax.experimental import pallas as pl
from jax.experimental.pallas import tpu as pltpu

_BF16_SUBLANE = 16      # bf16 sublane packing: rows per vreg
_MAX_TB = 512           # fills the 256^2 MXU M-dim twice; amortizes grid overhead
_VMEM_BUDGET = 48 << 20  # leave headroom under v7x's 64 MiB physical VMEM


def _round_up(x: int, m: int) -> int:
    return ((x + m - 1) // m) * m


def _choose_tb(batch: int) -> int:
    """Pick a batch tile: multiple of 16, <= 512, padding < TB, >=2 blocks when possible."""
    b_min = max(batch, _BF16_SUBLANE)
    n_blocks = pl.cdiv(b_min, _MAX_TB)
    # Guarantee at least 2 grid steps for mid-size batches so the "parallel" batch
    # axis can shard across v7x's two TensorCores (no effect on v5e/v6e).
    if n_blocks < 2 and b_min > _BF16_SUBLANE:
        n_blocks = 2
    tb = _round_up(pl.cdiv(b_min, n_blocks), _BF16_SUBLANE)
    return min(tb, _MAX_TB)


def _make_mlp_mean_kernel(n_layers: int):
    """Pallas kernel: mean = MLP(obs) for one batch tile."""

    def kernel(*refs):
        # refs layout:
        #   [0]                      obs_ref          [TB, ob_dim]   (bf16)
        #   [1 .. 2*(n_layers+1)]    (w, b) pairs     w_i: [in, out] (bf16), b_i: [1, out] (f32)
        #   [-1]                     mean_ref (out)   [TB, ac_dim]   (f32)
        obs_ref = refs[0]
        n_linear = n_layers + 1
        w_refs = refs[1:1 + 2 * n_linear:2]
        b_refs = refs[2:2 + 2 * n_linear:2]
        mean_ref = refs[-1]

        x = obs_ref[...]  # bf16, streamed per grid step
        # Hidden layers: bf16 MXU matmul with f32 accumulation, then f32 bias + tanh.
        for i in range(n_layers):
            acc = jnp.dot(x, w_refs[i][...], preferred_element_type=jnp.float32)
            x = jnp.tanh(acc + b_refs[i][...]).astype(jnp.bfloat16)
        # Output layer -> mean of the Normal distribution (f32, un-padded ac_dim).
        mean_ref[...] = (
            jnp.dot(x, w_refs[n_layers][...], preferred_element_type=jnp.float32)
            + b_refs[n_layers][...]
        )

    return kernel


def init_mlp_policy_params(key, ob_dim, ac_dim, n_layers, size):
    """Deterministic synthetic params mimicking PyTorch nn.Linear default init."""
    dims = [ob_dim] + [size] * n_layers + [ac_dim]
    params = []
    for i in range(len(dims) - 1):
        fan_in, fan_out = dims[i], dims[i + 1]
        key, kw, kb = jax.random.split(key, 3)
        bound = 1.0 / jnp.sqrt(jnp.float32(fan_in))
        w = jax.random.uniform(kw, (fan_in, fan_out), jnp.float32, -bound, bound)
        b = jax.random.uniform(kb, (1, fan_out), jnp.float32, -bound, bound)
        params.append((w, b))
    logstd = jnp.zeros((1, ac_dim), jnp.float32)  # nn.Parameter(torch.zeros(ac_dim))
    return params, logstd


@functools.partial(jax.jit, static_argnames=("n_layers",))
def mlp_policy_forward(obs, params_flat, logstd, *, n_layers):
    """Returns (mean, std) of the Normal action distribution.

    obs:         [B, ob_dim] float32
    params_flat: flat tuple (w0, b0, w1, b1, ..., w_out, b_out), w_i: [in, out], b_i: [1, out]
    logstd:      [ac_dim] or [1, ac_dim] float32
    """
    B, ob_dim = obs.shape
    ws = list(params_flat[0::2])
    bs = list(params_flat[1::2])
    assert len(ws) == n_layers + 1
    ac_dim = ws[-1].shape[-1]

    # --- Cast weights + obs to bf16 once (MXU-native); biases stay f32. ---
    ws_k = [w.astype(jnp.bfloat16) for w in ws]
    bs_k = list(bs)

    # --- Batch tiling: padding < TB, >= 2 blocks for mid-size batches (v7x). ---
    TB = _choose_tb(B)

    # --- VMEM budget for the resident-weights scheme (weights live in VMEM across
    #     grid steps; obs/mean are double-buffered). Shrink TB if streaming buffers
    #     would blow the budget; if the weights alone don't fit, this layout needs
    #     K-tiling instead.
    weight_bytes = sum(w.size * 2 for w in ws_k) + sum(b.size * 4 for b in bs_k)
    # TODO(synk): if weight_bytes alone exceeds ~48 MiB (very large `size` on v7x),
    # fall back to K-tiling the hidden weights over an extra "arbitrary" grid axis.
    def _stream_bytes(tb):
        return 2 * (tb * ob_dim * 2 + tb * ac_dim * 4)  # double-buffered obs(bf16)+mean(f32)
    while weight_bytes + _stream_bytes(TB) > _VMEM_BUDGET and TB > _BF16_SUBLANE:
        TB = _round_up(TB // 2, _BF16_SUBLANE)
    vmem_limit = min(64 << 20,
                     max(32 << 20, int(1.5 * (weight_bytes + _stream_bytes(TB))) + (1 << 20)))

    B_pad = _round_up(max(B, TB), TB)
    obs_k = obs.astype(jnp.bfloat16)
    if B_pad != B:
        obs_k = jnp.pad(obs_k, ((0, B_pad - B), (0, 0)))
    n_blocks = B_pad // TB

    kernel = _make_mlp_mean_kernel(n_layers)

    in_specs = [pl.BlockSpec((TB, ob_dim), lambda i: (i, 0))]
    kernel_args = [obs_k]
    for w, b in zip(ws_k, bs_k):
        # Full-array blocks with a constant index_map -> resident in VMEM across steps.
        in_specs.append(pl.BlockSpec(w.shape, lambda i: (0, 0)))
        in_specs.append(pl.BlockSpec(b.shape, lambda i: (0, 0)))
        kernel_args.append(w)
        kernel_args.append(b)

    # Un-padded output: block last dim == full array dim (legal), no wrapper slice copy.
    out_spec = pl.BlockSpec((TB, ac_dim), lambda i: (i, 0))

    # --- Cost estimate reflecting real (un-padded, bf16-obs) traffic. ---
    dims = [ob_dim] + [w.shape[1] for w in ws[:-1]] + [ac_dim]
    flops = 2 * B_pad * sum(dims[i] * dims[i + 1] for i in range(len(dims) - 1))
    transcendentals = B_pad * sum(w.shape[1] for w in ws[:-1])  # tanh per hidden unit
    bytes_accessed = (
        obs_k.size * 2                      # bf16 obs stream
        + sum(w.size * 2 for w in ws_k)     # bf16 weights (resident, read once)
        + sum(b.size * 4 for b in bs_k)     # f32 biases
        + B_pad * ac_dim * 4                # f32 mean writeback, un-padded
    )

    mean_padded = pl.pallas_call(
        kernel,
        out_shape=jax.ShapeDtypeStruct((B_pad, ac_dim), jnp.float32),
        grid=(n_blocks,),
        in_specs=in_specs,
        out_specs=out_spec,
        compiler_params=pltpu.CompilerParams(
            dimension_semantics=("parallel",),
            vmem_limit_bytes=vmem_limit,
        ),
        cost_estimate=pl.CostEstimate(
            flops=flops,
            transcendentals=transcendentals,
            bytes_accessed=bytes_accessed,
        ),
    )(*kernel_args)

    mean = mean_padded[:B] if B_pad != B else mean_padded
    # std = exp(logstd): obs-independent, plain JAX. Accept [ac_dim] or [1, ac_dim].
    std = jnp.exp(jnp.asarray(logstd)).reshape(ac_dim)
    return mean, std


if __name__ == "__main__":
    # Small shapes consistent with the module's constructor.
    B = 24         # batch of observations (exercises multi-block grid + row padding)
    ob_dim = 16
    ac_dim = 4
    n_layers = 2
    size = 32      # hidden width

    key = jax.random.PRNGKey(0)
    key, k_obs, k_params = jax.random.split(key, 3)

    obs = jax.random.normal(k_obs, (B, ob_dim), jnp.float32)
    params, logstd = init_mlp_policy_params(k_params, ob_dim, ac_dim, n_layers, size)
    params_flat = tuple(x for wb in params for x in wb)

    mean, std = mlp_policy_forward(obs, params_flat, logstd, n_layers=n_layers)
    jax.block_until_ready((mean, std))

    # Sanity check vs a plain-JAX f32 reference of the same MLP.
    x = obs
    for w, b in params[:-1]:
        x = jnp.tanh(x @ w + b)
    w_out, b_out = params[-1]
    mean_ref = x @ w_out + b_out
    std_ref = jnp.exp(logstd).reshape(ac_dim)
    assert mean.shape == (B, ac_dim) and std.shape == (ac_dim,)
    # bf16 obs + bf16 matmuls with f32 accumulation -> looser tolerance than pure f32.
    assert jnp.allclose(mean, mean_ref, atol=3e-2, rtol=3e-2), (
        f"max abs err {jnp.max(jnp.abs(mean - mean_ref))}"
    )
    assert jnp.allclose(std, std_ref, atol=1e-6)

    print("KERNEL_OK")
</pallas_src>

<mosaic_0001>
module attributes {stable_mosaic.version = 11 : i64} {
  func.func @kernel(%arg0: i32, %arg1: memref<16x16xbf16, #tpu.memory_space<vmem>>, %arg2: memref<16x32xbf16, #tpu.memory_space<vmem>>, %arg3: memref<1x32xf32, #tpu.memory_space<vmem>>, %arg4: memref<32x32xbf16, #tpu.memory_space<vmem>>, %arg5: memref<1x32xf32, #tpu.memory_space<vmem>>, %arg6: memref<32x4xbf16, #tpu.memory_space<vmem>>, %arg7: memref<1x4xf32, #tpu.memory_space<vmem>>, %arg8: memref<16x4xf32, #tpu.memory_space<vmem>>) attributes {dimension_semantics = [#tpu.dimension_semantics<parallel>], iteration_bounds = array<i64: 2>, scalar_prefetch = 0 : i64, scratch_operands = 0 : i64, tpu.core_type = #tpu.core_type<tc>, window_params = [{transform_indices = @transform_0, window_bounds = array<i64: 16, 16>}, {pipeline_mode = #tpu.pipeline_mode<synchronous>, transform_indices = @transform_1, window_bounds = array<i64: 16, 32>}, {pipeline_mode = #tpu.pipeline_mode<synchronous>, transform_indices = @transform_2, window_bounds = array<i64: 1, 32>}, {pipeline_mode = #tpu.pipeline_mode<synchronous>, transform_indices = @transform_3, window_bounds = array<i64: 32, 32>}, {pipeline_mode = #tpu.pipeline_mode<synchronous>, transform_indices = @transform_4, window_bounds = array<i64: 1, 32>}, {pipeline_mode = #tpu.pipeline_mode<synchronous>, transform_indices = @transform_5, window_bounds = array<i64: 32, 4>}, {pipeline_mode = #tpu.pipeline_mode<synchronous>, transform_indices = @transform_6, window_bounds = array<i64: 1, 4>}, {transform_indices = @transform_7, window_bounds = array<i64: 16, 4>}]} {
    %c0 = arith.constant 0 : index
    %c0_0 = arith.constant 0 : index
    %0 = vector.load %arg1[%c0, %c0_0] : memref<16x16xbf16, #tpu.memory_space<vmem>>, vector<16x16xbf16>
    %c0_1 = arith.constant 0 : index
    %c0_2 = arith.constant 0 : index
    %1 = vector.load %arg2[%c0_1, %c0_2] : memref<16x32xbf16, #tpu.memory_space<vmem>>, vector<16x32xbf16>
    %cst = arith.constant dense<0.000000e+00> : vector<16x32xf32>
    %2 = tpu.matmul %0, %1, %cst {dimension_numbers = #tpu.dot_dimension_numbers<[1], [0], [0], [1], [0, 0, 1, 1], [], []>} : vector<16x16xbf16>, vector<16x32xbf16>, vector<16x32xf32> -> vector<16x32xf32>
    %c0_3 = arith.constant 0 : index
    %c0_4 = arith.constant 0 : index
    %3 = vector.load %arg3[%c0_3, %c0_4] : memref<1x32xf32, #tpu.memory_space<vmem>>, vector<1x32xf32>
    %4 = vector.broadcast %3 : vector<1x32xf32> to vector<16x32xf32>
    %5 = arith.addf %2, %4 : vector<16x32xf32>
    %6 = math.tanh %5 : vector<16x32xf32>
    %7 = arith.truncf %6 : vector<16x32xf32> to vector<16x32xbf16>
    %c0_5 = arith.constant 0 : index
    %c0_6 = arith.constant 0 : index
    %8 = vector.load %arg4[%c0_5, %c0_6] : memref<32x32xbf16, #tpu.memory_space<vmem>>, vector<32x32xbf16>
    %cst_7 = arith.constant dense<0.000000e+00> : vector<16x32xf32>
    %9 = tpu.matmul %7, %8, %cst_7 {dimension_numbers = #tpu.dot_dimension_numbers<[1], [0], [0], [1], [0, 0, 1, 1], [], []>} : vector<16x32xbf16>, vector<32x32xbf16>, vector<16x32xf32> -> vector<16x32xf32>
    %c0_8 = arith.constant 0 : index
    %c0_9 = arith.constant 0 : index
    %10 = vector.load %arg5[%c0_8, %c0_9] : memref<1x32xf32, #tpu.memory_space<vmem>>, vector<1x32xf32>
    %11 = vector.broadcast %10 : vector<1x32xf32> to vector<16x32xf32>
    %12 = arith.addf %9, %11 : vector<16x32xf32>
    %13 = math.tanh %12 : vector<16x32xf32>
    %14 = arith.truncf %13 : vector<16x32xf32> to vector<16x32xbf16>
    %c0_10 = arith.constant 0 : index
    %c0_11 = arith.constant 0 : index
    %15 = vector.load %arg6[%c0_10, %c0_11] : memref<32x4xbf16, #tpu.memory_space<vmem>>, vector<32x4xbf16>
    %cst_12 = arith.constant dense<0.000000e+00> : vector<16x4xf32>
    %16 = tpu.matmul %14, %15, %cst_12 {dimension_numbers = #tpu.dot_dimension_numbers<[1], [0], [0], [1], [0, 0, 1, 1], [], []>} : vector<16x32xbf16>, vector<32x4xbf16>, vector<16x4xf32> -> vector<16x4xf32>
    %c0_13 = arith.constant 0 : index
    %c0_14 = arith.constant 0 : index
    %17 = vector.load %arg7[%c0_13, %c0_14] : memref<1x4xf32, #tpu.memory_space<vmem>>, vector<1x4xf32>
    %18 = vector.broadcast %17 : vector<1x4xf32> to vector<16x4xf32>
    %19 = arith.addf %16, %18 : vector<16x4xf32>
    %c0_15 = arith.constant 0 : index
    %c0_16 = arith.constant 0 : index
    %20 = vector.load %arg8[%c0_15, %c0_16] : memref<16x4xf32, #tpu.memory_space<vmem>>, vector<16x4xf32>
    tpu.vector_store %arg8[%c0_15, %c0_16], %19 {strides = array<i32>} : memref<16x4xf32, #tpu.memory_space<vmem>>, vector<16x4xf32>,
    return
  }
  func.func @transform_0(%arg0: i32) -> (i32, i32) {
    %c0_i32 = arith.constant 0 : i32
    %c0_i32_0 = arith.constant 0 : i32
    return %arg0, %c0_i32 : i32, i32
  }
  func.func @transform_1(%arg0: i32) -> (i32, i32) {
    %c0_i32 = arith.constant 0 : i32
    %c0_i32_0 = arith.constant 0 : i32
    %c0_i32_1 = arith.constant 0 : i32
    return %c0_i32, %c0_i32_0 : i32, i32
  }
  func.func @transform_2(%arg0: i32) -> (i32, i32) {
    %c0_i32 = arith.constant 0 : i32
    %c0_i32_0 = arith.constant 0 : i32
    %c0_i32_1 = arith.constant 0 : i32
    return %c0_i32, %c0_i32_0 : i32, i32
  }
  func.func @transform_3(%arg0: i32) -> (i32, i32) {
    %c0_i32 = arith.constant 0 : i32
    %c0_i32_0 = arith.constant 0 : i32
    %c0_i32_1 = arith.constant 0 : i32
    return %c0_i32, %c0_i32_0 : i32, i32
  }
  func.func @transform_4(%arg0: i32) -> (i32, i32) {
    %c0_i32 = arith.constant 0 : i32
    %c0_i32_0 = arith.constant 0 : i32
    %c0_i32_1 = arith.constant 0 : i32
    return %c0_i32, %c0_i32_0 : i32, i32
  }
  func.func @transform_5(%arg0: i32) -> (i32, i32) {
    %c0_i32 = arith.constant 0 : i32
    %c0_i32_0 = arith.constant 0 : i32
    %c0_i32_1 = arith.constant 0 : i32
    return %c0_i32, %c0_i32_0 : i32, i32
  }
  func.func @transform_6(%arg0: i32) -> (i32, i32) {
    %c0_i32 = arith.constant 0 : i32
    %c0_i32_0 = arith.constant 0 : i32
    %c0_i32_1 = arith.constant 0 : i32
    return %c0_i32, %c0_i32_0 : i32, i32
  }
  func.func @transform_7(%arg0: i32) -> (i32, i32) {
    %c0_i32 = arith.constant 0 : i32
    %c0_i32_0 = arith.constant 0 : i32
    return %arg0, %c0_i32 : i32, i32
  }
}

</mosaic_0001>

<llo_original>
// kernel: mlp_policy_forward.1
$region0: #{mlp_policy_forward.1}
  #allocation0 [shape = 'u32[]', space=smem, size = 0x4, offset = 0x4, fixed_abs, tag = 'smem constant byte address 0x4 - core index']
  #allocation1 [shape = 'u32[144,128]{1,0:T(1,128)}', space=vmem, size = 0x12000, scoped, tag = 'internal scratch']
  %s0 = inlined_call_operand.vmem [shape: bf16[32,16], index: 0, kind: input, shape index: {}]
  %s1 = inlined_call_operand.vmem [shape: bf16[16,32], index: 1, kind: input, shape index: {}]
  %s2 = inlined_call_operand.vmem [shape: f32[1,32], index: 2, kind: input, shape index: {}]
  %s3 = inlined_call_operand.vmem [shape: bf16[32,32], index: 3, kind: input, shape index: {}]
  %s4 = inlined_call_operand.vmem [shape: f32[1,32], index: 4, kind: input, shape index: {}]
  %s5 = inlined_call_operand.vmem [shape: bf16[32,4], index: 5, kind: input, shape index: {}]
  %s6 = inlined_call_operand.vmem [shape: f32[1,4], index: 6, kind: input, shape index: {}]
  %s7 = inlined_call_operand.vmem [shape: f32[32,4], index: 7, kind: output, shape index: {}]
  %s8 = sld [smem:[#allocation0]]
  $region61: #{mlp_policy_forward.1} parent=0
    _
  %s10 = ssub.s32 1, %s8
  %s11 = scalar_select 0, %s10, %s8
  loop: start=0, step=1, limit=4
  $region2: #{mlp_policy_forward.1} parent=0 // loop_pre_header
    _
  $region3: #{mlp_policy_forward.1} parent=0 // loop_header
    %s13 = sphi 0, %s17
    %p14 = scmp.ge.s32.totalorder %s13, 4
    %s23 = sphi 0, %s25
    %s26 = sphi 0, %s23
    %s27 = sphi 0, %s26
    %s43 = sphi 0, %s27
    %s47 = sphi 0, %s47
    %s49 = sphi 0, %s47
    %s50 = sphi 0, %s49
    %s64 = sphi 0, %s50
    %s68 = sphi 0, %s68
    %s70 = sphi 0, %s68
    %s71 = sphi 0, %s70
    %s85 = sphi 0, %s71
    %s89 = sphi 0, %s89
    %s91 = sphi 0, %s89
    %s92 = sphi 0, %s91
    %s106 = sphi 0, %s92
    %s110 = sphi 0, %s110
    %s112 = sphi 0, %s110
    %s113 = sphi 0, %s112
    %s127 = sphi 0, %s113
    %s131 = sphi 0, %s131
    %s133 = sphi 0, %s131
    %s134 = sphi 0, %s133
    %s148 = sphi 0, %s134
    %s152 = sphi 0, %s152
    %s154 = sphi 0, %s152
    %s155 = sphi 0, %s154
    %s169 = sphi 0, %s155
    %s175 = sphi 0, %s177
    %s178 = sphi 0, %s175
    %s179 = sphi 0, %s178
    %s195 = sphi 0, %s179
  $region4: #{mlp_policy_forward.1} parent=0 // loop_header_branch
    %16 = sbr.rel (%p14) target = $region8
  $region5: #{mlp_policy_forward.1} parent=0 // loop_body
    %s18 = ssub.s32 %s13, 1
    %s19 = ssub.s32 %s13, 2
    %s20 = sadd.s32 %s13, 1
    %s21 = ssub.s32 %s13, %s20
    %p22 = scmp.eq.s32.totalorder %s21, 0
    %s24 = sadd.s32 %s23, 1
    %s25 = scalar_select %p22, %s23, %s24
    %p28 = pneg %p22
    %p29 = scmp.eq.s32.totalorder %s13, 1
    %p30 = por %p28, %p29
    %p31 = scmp.ne.s32.totalorder %s23, %s26
    %p32 = scmp.eq.s32.totalorder %s13, 0
    %p33 = por %p31, %p32
    %p34 = scmp.ne.s32.totalorder %s23, %s26
    %p35 = scmp.eq.s32.totalorder %s18, 1
    %p36 = por %p34, %p35
    %p37 = scmp.ne.s32.totalorder %s26, %s27
    %p38 = scmp.eq.s32.totalorder %s18, 0
    %p39 = por %p37, %p38
    %p40 = scmp.ne.s32.totalorder %s26, %s27
    %p41 = scmp.eq.s32.totalorder %s19, 1
    %p42 = por %p40, %p41
    %p44 = scmp.ne.s32.totalorder %s27, %s43
    %p45 = scmp.eq.s32.totalorder %s19, 0
    %p46 = por %p44, %p45
    %s48 = sadd.s32 %s47, 1
    %p51 = scmp.eq.s32.totalorder %s13, 1
    %p52 = scmp.ne.s32.totalorder %s47, %s49
    %p53 = scmp.eq.s32.totalorder %s13, 0
    %p54 = por %p52, %p53
    %p55 = scmp.ne.s32.totalorder %s47, %s49
    %p56 = scmp.eq.s32.totalorder %s18, 1
    %p57 = por %p55, %p56
    %p58 = scmp.ne.s32.totalorder %s49, %s50
    %p59 = scmp.eq.s32.totalorder %s18, 0
    %p60 = por %p58, %p59
    %p61 = scmp.ne.s32.totalorder %s49, %s50
    %p62 = scmp.eq.s32.totalorder %s19, 1
    %p63 = por %p61, %p62
    %p65 = scmp.ne.s32.totalorder %s50, %s64
    %p66 = scmp.eq.s32.totalorder %s19, 0
    %p67 = por %p65, %p66
    %s69 = sadd.s32 %s68, 1
    %p72 = scmp.eq.s32.totalorder %s13, 1
    %p73 = scmp.ne.s32.totalorder %s68, %s70
    %p74 = scmp.eq.s32.totalorder %s13, 0
    %p75 = por %p73, %p74
    %p76 = scmp.ne.s32.totalorder %s68, %s70
    %p77 = scmp.eq.s32.totalorder %s18, 1
    %p78 = por %p76, %p77
    %p79 = scmp.ne.s32.totalorder %s70, %s71
    %p80 = scmp.eq.s32.totalorder %s18, 0
    %p81 = por %p79, %p80
    %p82 = scmp.ne.s32.totalorder %s70, %s71
    %p83 = scmp.eq.s32.totalorder %s19, 1
    %p84 = por %p82, %p83
    %p86 = scmp.ne.s32.totalorder %s71, %s85
    %p87 = scmp.eq.s32.totalorder %s19, 0
    %p88 = por %p86, %p87
    %s90 = sadd.s32 %s89, 1
    %p93 = scmp.eq.s32.totalorder %s13, 1
    %p94 = scmp.ne.s32.totalorder %s89, %s91
    %p95 = scmp.eq.s32.totalorder %s13, 0
    %p96 = por %p94, %p95
    %p97 = scmp.ne.s32.totalorder %s89, %s91
    %p98 = scmp.eq.s32.totalorder %s18, 1
    %p99 = por %p97, %p98
    %p100 = scmp.ne.s32.totalorder %s91, %s92
    %p101 = scmp.eq.s32.totalorder %s18, 0
    %p102 = por %p100, %p101
    %p103 = scmp.ne.s32.totalorder %s91, %s92
    %p104 = scmp.eq.s32.totalorder %s19, 1
    %p105 = por %p103, %p104
    %p107 = scmp.ne.s32.totalorder %s92, %s106
    %p108 = scmp.eq.s32.totalorder %s19, 0
    %p109 = por %p107, %p108
    %s111 = sadd.s32 %s110, 1
    %p114 = scmp.eq.s32.totalorder %s13, 1
    %p115 = scmp.ne.s32.totalorder %s110, %s112
    %p116 = scmp.eq.s32.totalorder %s13, 0
    %p117 = por %p115, %p116
    %p118 = scmp.ne.s32.totalorder %s110, %s112
    %p119 = scmp.eq.s32.totalorder %s18, 1
    %p120 = por %p118, %p119
    %p121 = scmp.ne.s32.totalorder %s112, %s113
    %p122 = scmp.eq.s32.totalorder %s18, 0
    %p123 = por %p121, %p122
    %p124 = scmp.ne.s32.totalorder %s112, %s113
    %p125 = scmp.eq.s32.totalorder %s19, 1
    %p126 = por %p124, %p125
    %p128 = scmp.ne.s32.totalorder %s113, %s127
    %p129 = scmp.eq.s32.totalorder %s19, 0
    %p130 = por %p128, %p129
    %s132 = sadd.s32 %s131, 1
    %p135 = scmp.eq.s32.totalorder %s13, 1
    %p136 = scmp.ne.s32.totalorder %s131, %s133
    %p137 = scmp.eq.s32.totalorder %s13, 0
    %p138 = por %p136, %p137
    %p139 = scmp.ne.s32.totalorder %s131, %s133
    %p140 = scmp.eq.s32.totalorder %s18, 1
    %p141 = por %p139, %p140
    %p142 = scmp.ne.s32.totalorder %s133, %s134
    %p143 = scmp.eq.s32.totalorder %s18, 0
    %p144 = por %p142, %p143
    %p145 = scmp.ne.s32.totalorder %s133, %s134
    %p146 = scmp.eq.s32.totalorder %s19, 1
    %p147 = por %p145, %p146
    %p149 = scmp.ne.s32.totalorder %s134, %s148
    %p150 = scmp.eq.s32.totalorder %s19, 0
    %p151 = por %p149, %p150
    %s153 = sadd.s32 %s152, 1
    %p156 = scmp.eq.s32.totalorder %s13, 1
    %p157 = scmp.ne.s32.totalorder %s152, %s154
    %p158 = scmp.eq.s32.totalorder %s13, 0
    %p159 = por %p157, %p158
    %p160 = scmp.ne.s32.totalorder %s152, %s154
    %p161 = scmp.eq.s32.totalorder %s18, 1
    %p162 = por %p160, %p161
    %p163 = scmp.ne.s32.totalorder %s154, %s155
    %p164 = scmp.eq.s32.totalorder %s18, 0
    %p165 = por %p163, %p164
    %p166 = scmp.ne.s32.totalorder %s154, %s155
    %p167 = scmp.eq.s32.totalorder %s19, 1
    %p168 = por %p166, %p167
    %p170 = scmp.ne.s32.totalorder %s155, %s169
    %p171 = scmp.eq.s32.totalorder %s19, 0
    %p172 = por %p170, %p171
    %s173 = ssub.s32 %s13, %s20
    %p174 = scmp.eq.s32.totalorder %s173, 0
    %s176 = sadd.s32 %s175, 1
    %s177 = scalar_select %p174, %s175, %s176
    %p180 = pneg %p174
    %p181 = scmp.eq.s32.totalorder %s13, 1
    %p182 = por %p180, %p181
    %p183 = scmp.ne.s32.totalorder %s175, %s178
    %p184 = scmp.eq.s32.totalorder %s13, 0
    %p185 = por %p183, %p184
    %p186 = scmp.ne.s32.totalorder %s175, %s178
    %p187 = scmp.eq.s32.totalorder %s18, 1
    %p188 = por %p186, %p187
    %p189 = scmp.ne.s32.totalorder %s178, %s179
    %p190 = scmp.eq.s32.totalorder %s18, 0
    %p191 = por %p189, %p190
    %p192 = scmp.ne.s32.totalorder %s178, %s179
    %p193 = scmp.eq.s32.totalorder %s19, 1
    %p194 = por %p192, %p193
    %p196 = scmp.ne.s32.totalorder %s179, %s195
    %p197 = scmp.eq.s32.totalorder %s19, 0
    %p198 = por %p196, %p197
    %p199 = scmp.le.s32.totalorder 1, %s13
    %p200 = scmp.lt.s32.totalorder %s13, 3
    %p201 = pnand %p199, %p200
    %p202 = pneg %p201
    // Predicated region
    $region9: #{mlp_policy_forward.1} parent=5 // pred_check
      _
    $region10: #{mlp_policy_forward.1} parent=5 // pred_check_branch
      %204 = sbr.rel (%p201) target = $region12
    $region11: #{mlp_policy_forward.1} parent=5 // pred_region
      %s205 = ssub.s32 %s13, 1
      // Predicated region
      $region13: #{mlp_policy_forward.1} parent=11 // pred_check
        %p206 = pneg %p60
      $region14: #{mlp_policy_forward.1} parent=11 // pred_check_branch
        %208 = sbr.rel (%p206) target = $region16
      $region15: #{mlp_policy_forward.1} parent=11 // pred_region
        _
      $region16: #{mlp_policy_forward.1} parent=11 // pred_fallthru
        _
      // Predicated region
      $region17: #{mlp_policy_forward.1} parent=11 // pred_check
        %p209 = pneg %p81
      $region18: #{mlp_policy_forward.1} parent=11 // pred_check_branch
        %211 = sbr.rel (%p209) target = $region20
      $region19: #{mlp_policy_forward.1} parent=11 // pred_region
        _
      $region20: #{mlp_policy_forward.1} parent=11 // pred_fallthru
        _
      // Predicated region
      $region21: #{mlp_policy_forward.1} parent=11 // pred_check
        %p212 = pneg %p102
      $region22: #{mlp_policy_forward.1} parent=11 // pred_check_branch
        %214 = sbr.rel (%p212) target = $region24
      $region23: #{mlp_policy_forward.1} parent=11 // pred_region
        _
      $region24: #{mlp_policy_forward.1} parent=11 // pred_fallthru
        _
      // Predicated region
      $region25: #{mlp_policy_forward.1} parent=11 // pred_check
        %p215 = pneg %p123
      $region26: #{mlp_policy_forward.1} parent=11 // pred_check_branch
        %217 = sbr.rel (%p215) target = $region28
      $region27: #{mlp_policy_forward.1} parent=11 // pred_region
        _
      $region28: #{mlp_policy_forward.1} parent=11 // pred_fallthru
        _
      // Predicated region
      $region29: #{mlp_policy_forward.1} parent=11 // pred_check
        %p218 = pneg %p144
      $region30: #{mlp_policy_forward.1} parent=11 // pred_check_branch
        %220 = sbr.rel (%p218) target = $region32
      $region31: #{mlp_policy_forward.1} parent=11 // pred_region
        _
      $region32: #{mlp_policy_forward.1} parent=11 // pred_fallthru
        _
      // Predicated region
      $region33: #{mlp_policy_forward.1} parent=11 // pred_check
        %p221 = pneg %p165
      $region34: #{mlp_policy_forward.1} parent=11 // pred_check_branch
        %223 = sbr.rel (%p221) target = $region36
      $region35: #{mlp_policy_forward.1} parent=11 // pred_region
        _
      $region36: #{mlp_policy_forward.1} parent=11 // pred_fallthru
        _
    $region12: #{mlp_policy_forward.1} parent=5 // pred_fallthru
      _
    %p224 = scmp.lt.s32.totalorder %s13, 2
    // Predicated region
    $region37: #{mlp_policy_forward.1} parent=5 // pred_check
      %p225 = pneg %p224
    $region38: #{mlp_policy_forward.1} parent=5 // pred_check_branch
      %227 = sbr.rel (%p225) target = $region40
    $region39: #{mlp_policy_forward.1} parent=5 // pred_region
      // Predicated region
      $region41: #{mlp_policy_forward.1} parent=39 // pred_check
        %p228 = pneg %p33
      $region42: #{mlp_policy_forward.1} parent=39 // pred_check_branch
        %230 = sbr.rel (%p228) target = $region44
      $region43: #{mlp_policy_forward.1} parent=39 // pred_region
        %s231 = smul.u32 2, %s13
        %p232 = scmp.lt.s32.totalorder %s231, 3
        %s233 = scalar_select %p232, %s231, 3
        %s234 = smul.addr %s233, 4
        %s235 = scalar_lea.vmem %s0, %s234
        %s236 = smul.u32 2, %s13
      $region44: #{mlp_policy_forward.1} parent=39 // pred_fallthru
        _
    $region40: #{mlp_policy_forward.1} parent=5 // pred_fallthru
      _
    %p237 = scmp.le.s32.totalorder 1, %s13
    %p238 = scmp.lt.s32.totalorder %s13, 3
    %p239 = pnand %p237, %p238
    %p240 = pneg %p239
    // Predicated region
    $region45: #{mlp_policy_forward.1} parent=5 // pred_check
      _
    $region46: #{mlp_policy_forward.1} parent=5 // pred_check_branch
      %242 = sbr.rel (%p239) target = $region48
    $region47: #{mlp_policy_forward.1} parent=5 // pred_region
      %s243 = ssub.s32 %s13, 1
      %s244 = smul.u32 2, %s18
      %p245 = scmp.lt.s32.totalorder %s244, 3
      %s246 = scalar_select %p245, %s244, 3
      %s247 = smul.addr %s246, 4
      %s248 = scalar_lea.vmem %s0, %s247
      %p249 = pneg %p39
      %p250 = pneg %p36
      %p251 = pneg %p60
      %p252 = pneg %p57
      %p253 = pneg %p81
      %p254 = pneg %p78
      %p255 = pneg %p102
      %p256 = pneg %p99
      %p257 = pneg %p123
      %p258 = pneg %p120
      %p259 = pneg %p144
      %p260 = pneg %p141
      %p261 = pneg %p165
      %p262 = pneg %p162
      %p263 = pneg %p191
      %p264 = pneg %p188
      %s265 = smul.u32 2, %s18
      %p266 = scmp.lt.s32.totalorder %s265, 3
      %s267 = scalar_select %p266, %s265, 3
      %s268 = smul.addr %s267, 8
      %s269 = scalar_lea.vmem %s7, %s268
      %s270 = smul.u32 2, %s18
      %p271 = scmp.lt.s32.totalorder %s270, 3
      %s272 = scalar_select %p271, %s270, 3
      %s273 = smul.addr %s272, 4
      %s274 = scalar_lea.vmem %s0, %s273
      %s275 = smul.u32 2, %s18
      %s276 = smul.u32 2, %s18
      %p277 = scmp.lt.s32.totalorder %s276, 3
      %s278 = scalar_select %p277, %s276, 3
      %s279 = smul.addr %s278, 8
      %s280 = scalar_lea.vmem %s7, %s279
      %s281 = smul.u32 2, %s18
      %v283 = vld [vmem:[%s274] sm:$0xf]
      %v284 = vld [vmem:[%s274 + $0x4] sm:$0xf]
      %v285 = vld [vmem:[%s1] sm:$0xf]
      %v286 = vld [vmem:[%s1 + $0x4] sm:$0xf]
      %v287 = vld [vmem:[%s2] sm:$0x1]
      %v289 = vlaneseq
      %v290 = vshrl.u32 %v289, 7
      %v291 = vsub.s32 0, %v290
      %v292 = vrot.slane %v287, %v291
      %v296 = vunpack.c.l.b16 %v283
      %v297 = vunpack.c.l.b16 %v284
      %v298 = vpack.c.b16 %v297, %v296
      %v301 = vunpack.c.l.b16 %v285
      %v302 = vunpack.c.l.b16 %v286
      %v303 = vpack.c.b16 %v302, %v301
      %vm305 = vcmask 130048
      %v307 = vsel %vm305, %v298, 0
      %309 = vmatprep.subr.bf16.mxu0 0
      %310 = vmatpush1.bf16.msra.mxu0 %v303
      %311 = vmatprep.subr.bf16.mxu0 0
      %312 = vmatpush1.bf16.msra.mxu0 0
      %313 = vmatprep.subr.bf16.mxu0 0
      %314 = vmatpush1.bf16.msra.mxu0 0
      %315 = vmatprep.subr.bf16.mxu0 0
      %316 = vmatpush1.bf16.msra.mxu0 0
      %317 = vmatprep.subr.bf16.mxu0 0
      %318 = vmatpush1.bf16.msra.mxu0 0
      %319 = vmatprep.subr.bf16.mxu0 0
      %320 = vmatpush1.bf16.msra.mxu0 0
      %321 = vmatprep.subr.bf16.mxu0 0
      %322 = vmatpush1.bf16.msra.mxu0 0
      %323 = vmatprep.subr.bf16.mxu0 0
      %324 = vmatpush1.bf16.msra.mxu0 0
      %325 = vmatprep.subr.bf16.mxu0 0
      %326 = vmatpush1.bf16.msra.mxu0 0
      %327 = vmatprep.subr.bf16.mxu0 0
      %328 = vmatpush1.bf16.msra.mxu0 0
      %329 = vmatprep.subr.bf16.mxu0 0
      %330 = vmatpush1.bf16.msra.mxu0 0
      %331 = vmatprep.subr.bf16.mxu0 0
      %332 = vmatpush1.bf16.msra.mxu0 0
      %333 = vmatprep.subr.bf16.mxu0 0
      %334 = vmatpush1.bf16.msra.mxu0 0
      %335 = vmatprep.subr.bf16.mxu0 0
      %336 = vmatpush1.bf16.msra.mxu0 0
      %337 = vmatprep.subr.bf16.mxu0 0
      %338 = vmatpush1.bf16.msra.mxu0 0
      %339 = vmatprep.subr.bf16.mxu0 0
      %340 = vmatpush1.bf16.msra.mxu0 0
      %341 = vmatprep.mubr.bf16.mxu0 0
      %342 = vmatmul.mubr.bf16.gmra.mrb[0].mxu0 %v307
      %v343 = vpop.f32.mrb[0].mxu0
      %v344 = vadd.f32 %v292, %v343
      %v345 = vpop.f32.mrb[0].mxu0
      %v346 = vpop.f32.mrb[0].mxu0
      %v347 = vadd.f32 %v292, %v346
      %v348 = vpop.f32.mrb[0].mxu0
      %349 = vdwg.mxu0
      %v350 = vtanh.pop %v344
      %v351 = vtanh.pop %v347
      %v352 = vpack.c.bf16 %v351, %v350
      %v353 = vld [vmem:[%s3] sm:$0xf]
      %v354 = vld [vmem:[%s3 + $0x4] sm:$0xf]
      %v355 = vld [vmem:[%s3 + $0x8] sm:$0xf]
      %v356 = vld [vmem:[%s3 + $0xc] sm:$0xf]
      %v357 = vld [vmem:[%s4] sm:$0x1]
      %v359 = vlaneseq
      %v360 = vshrl.u32 %v359, 7
      %v361 = vsub.s32 0, %v360
      %v362 = vrot.slane %v357, %v361
      %v368 = vunpack.c.l.b16 %v353
      %v369 = vunpack.c.l.b16 %v354
      %v370 = vunpack.c.l.b16 %v355
      %v371 = vunpack.c.l.b16 %v356
      %v372 = vpack.c.b16 %v369, %v368
      %v373 = vpack.c.b16 %v371, %v370
      %vm376 = vcmask 261120
      %v378 = vsel %vm376, %v352, 0
      %380 = vmatprep.subr.bf16.mxu0 0
      %381 = vmatpush1.bf16.msra.mxu0 %v372
      %382 = vmatprep.subr.bf16.mxu0 0
      %383 = vmatpush1.bf16.msra.mxu0 %v373
      %384 = vmatprep.subr.bf16.mxu0 0
      %385 = vmatpush1.bf16.msra.mxu0 0
      %386 = vmatprep.subr.bf16.mxu0 0
      %387 = vmatpush1.bf16.msra.mxu0 0
      %388 = vmatprep.subr.bf16.mxu0 0
      %389 = vmatpush1.bf16.msra.mxu0 0
      %390 = vmatprep.subr.bf16.mxu0 0
      %391 = vmatpush1.bf16.msra.mxu0 0
      %392 = vmatprep.subr.bf16.mxu0 0
      %393 = vmatpush1.bf16.msra.mxu0 0
      %394 = vmatprep.subr.bf16.mxu0 0
      %395 = vmatpush1.bf16.msra.mxu0 0
      %396 = vmatprep.subr.bf16.mxu0 0
      %397 = vmatpush1.bf16.msra.mxu0 0
      %398 = vmatprep.subr.bf16.mxu0 0
      %399 = vmatpush1.bf16.msra.mxu0 0
      %400 = vmatprep.subr.bf16.mxu0 0
      %401 = vmatpush1.bf16.msra.mxu0 0
      %402 = vmatprep.subr.bf16.mxu0 0
      %403 = vmatpush1.bf16.msra.mxu0 0
      %404 = vmatprep.subr.bf16.mxu0 0
      %405 = vmatpush1.bf16.msra.mxu0 0
      %406 = vmatprep.subr.bf16.mxu0 0
      %407 = vmatpush1.bf16.msra.mxu0 0
      %408 = vmatprep.subr.bf16.mxu0 0
      %409 = vmatpush1.bf16.msra.mxu0 0
      %410 = vmatprep.subr.bf16.mxu0 0
      %411 = vmatpush1.bf16.msra.mxu0 0
      %412 = vmatprep.mubr.bf16.mxu0 0
      %413 = vmatmul.mubr.bf16.gmra.mrb[0].mxu0 %v378
      %v414 = vpop.f32.mrb[0].mxu0
      %v415 = vadd.f32 %v362, %v414
      %v416 = vpop.f32.mrb[0].mxu0
      %v417 = vpop.f32.mrb[0].mxu0
      %v418 = vadd.f32 %v362, %v417
      %v419 = vpop.f32.mrb[0].mxu0
      %420 = vdwg.mxu0
      %v421 = vtanh.pop %v415
      %v422 = vtanh.pop %v418
      %v423 = vpack.c.bf16 %v422, %v421
      %v424 = vld [vmem:[%s5] sm:$0xf]
      %v425 = vld [vmem:[%s5 + $0x4] sm:$0xf]
      %v426 = vld [vmem:[%s5 + $0x8] sm:$0xf]
      %v427 = vld [vmem:[%s5 + $0xc] sm:$0xf]
      %v428 = vld [vmem:[%s6] sm:$0x1]
      %v430 = vlaneseq
      %v431 = vshrl.u32 %v430, 7
      %v432 = vsub.s32 0, %v431
      %v433 = vrot.slane %v428, %v432
      %v439 = vunpack.c.l.b16 %v424
      %v440 = vunpack.c.l.b16 %v425
      %v441 = vunpack.c.l.b16 %v426
      %v442 = vunpack.c.l.b16 %v427
      %v443 = vpack.c.b16 %v440, %v439
      %v444 = vpack.c.b16 %v442, %v441
      %v448 = vsel %vm376, %v423, 0
      %450 = vmatprep.subr.bf16.mxu0 0
      %451 = vmatpush1.bf16.msra.mxu0 %v443
      %452 = vmatprep.subr.bf16.mxu0 0
      %453 = vmatpush1.bf16.msra.mxu0 %v444
      %454 = vmatprep.subr.bf16.mxu0 0
      %455 = vmatpush1.bf16.msra.mxu0 0
      %456 = vmatprep.subr.bf16.mxu0 0
      %457 = vmatpush1.bf16.msra.mxu0 0
      %458 = vmatprep.subr.bf16.mxu0 0
      %459 = vmatpush1.bf16.msra.mxu0 0
      %460 = vmatprep.subr.bf16.mxu0 0
      %461 = vmatpush1.bf16.msra.mxu0 0
      %462 = vmatprep.subr.bf16.mxu0 0
      %463 = vmatpush1.bf16.msra.mxu0 0
      %464 = vmatprep.subr.bf16.mxu0 0
      %465 = vmatpush1.bf16.msra.mxu0 0
      %466 = vmatprep.subr.bf16.mxu0 0
      %467 = vmatpush1.bf16.msra.mxu0 0
      %468 = vmatprep.subr.bf16.mxu0 0
      %469 = vmatpush1.bf16.msra.mxu0 0
      %470 = vmatprep.subr.bf16.mxu0 0
      %471 = vmatpush1.bf16.msra.mxu0 0
      %472 = vmatprep.subr.bf16.mxu0 0
      %473 = vmatpush1.bf16.msra.mxu0 0
      %474 = vmatprep.subr.bf16.mxu0 0
      %475 = vmatpush1.bf16.msra.mxu0 0
      %476 = vmatprep.subr.bf16.mxu0 0
      %477 = vmatpush1.bf16.msra.mxu0 0
      %478 = vmatprep.subr.bf16.mxu0 0
      %479 = vmatpush1.bf16.msra.mxu0 0
      %480 = vmatprep.subr.bf16.mxu0 0
      %481 = vmatpush1.bf16.msra.mxu0 0
      %482 = vmatprep.mubr.bf16.mxu0 0
      %483 = vmatmul.mubr.bf16.gmra.mrb[0].mxu0 %v448
      %v484 = vpop.f32.mrb[0].mxu0
      %v485 = vadd.f32 %v433, %v484
      %v486 = vpop.f32.mrb[0].mxu0
      %v487 = vpop.f32.mrb[0].mxu0
      %v488 = vadd.f32 %v433, %v487
      %v489 = vpop.f32.mrb[0].mxu0
      %490 = vdwg.mxu0
      %vm491 = vcmask 31744
      %492 = vst.msk [vmem:[%s280] sm:$0xff] %vm491, %v485
      %493 = vst.msk [vmem:[%s280 + $0x8] sm:$0xff] %vm491, %v488
      %s494 = smul.u32 2, %s18
      %p495 = scmp.lt.s32.totalorder %s494, 3
      %s496 = scalar_select %p495, %s494, 3
      %s497 = smul.addr %s496, 8
      %s498 = scalar_lea.vmem %s7, %s497
      // Predicated region
      $region49: #{mlp_policy_forward.1} parent=47 // pred_check
        %p499 = pneg %p188
      $region50: #{mlp_policy_forward.1} parent=47 // pred_check_branch
        %501 = sbr.rel (%p499) target = $region52
      $region51: #{mlp_policy_forward.1} parent=47 // pred_region
        %s502 = smul.u32 2, %s18
      $region52: #{mlp_policy_forward.1} parent=47 // pred_fallthru
        _
    $region48: #{mlp_policy_forward.1} parent=5 // pred_fallthru
      _
    %p503 = scmp.le.s32.totalorder 2, %s13
    // Predicated region
    $region53: #{mlp_policy_forward.1} parent=5 // pred_check
      %p504 = pneg %p503
    $region54: #{mlp_policy_forward.1} parent=5 // pred_check_branch
      %506 = sbr.rel (%p504) target = $region56
    $region55: #{mlp_policy_forward.1} parent=5 // pred_region
      %s507 = ssub.s32 %s13, 2
      // Predicated region
      $region57: #{mlp_policy_forward.1} parent=55 // pred_check
        %p508 = pneg %p194
      $region58: #{mlp_policy_forward.1} parent=55 // pred_check_branch
        %510 = sbr.rel (%p508) target = $region60
      $region59: #{mlp_policy_forward.1} parent=55 // pred_region
        %s511 = smul.u32 2, %s19
        %p512 = scmp.lt.s32.totalorder %s511, 3
        %s513 = scalar_select %p512, %s511, 3
        %s514 = smul.addr %s513, 8
        %s515 = scalar_lea.vmem %s7, %s514
      $region60: #{mlp_policy_forward.1} parent=55 // pred_fallthru
        _
    $region56: #{mlp_policy_forward.1} parent=5 // pred_fallthru
      _
  $region6: #{mlp_policy_forward.1} parent=0 // loop_footer
    %s17 = sadd.s32 1, %s13
  $region7: #{mlp_policy_forward.1} parent=0 // loop_footer_branch
    %12 = sbr.rel target = $region3
  $region8: #{mlp_policy_forward.1} parent=0 // loop_exit
    _

</llo_original>
